<compile_context>
chip_gen: v5e
topology: v5e:2x2
jax: 0.10.0
libtpu: 0.0.40
codegen_flags: <defaults>
</compile_context>

<pallas_src>
import jax
import jax.numpy as jnp
from jax.experimental import pallas as pl
from jax.experimental.pallas import tpu as pltpu


def caps_mask_kernel(x_ref, o_ref):
    # x_ref / o_ref block: (TB, C, D)
    x = x_ref[...]
    tb, c, _ = x.shape

    # Squared L2 norm per capsule; argmax(sqrt(s)) == argmax(s) -> skip sqrt.
    sq = jnp.sum(x * x, axis=-1, keepdims=True)                # (TB, C, 1)
    m = jnp.max(sq, axis=1, keepdims=True)                     # (TB, 1, 1)

    # First index achieving the max (matches torch/jnp argmax tie-break),
    # built from reductions only (no lax.argmax needed).
    iota = jax.lax.broadcasted_iota(jnp.int32, (tb, c, 1), 1)  # (TB, C, 1)
    cand = jnp.where(sq == m, iota, jnp.int32(c))
    first = jnp.min(cand, axis=1, keepdims=True)               # (TB, 1, 1)
    mask = (iota == first).astype(x.dtype)                     # (TB, C, 1)

    # Lane-broadcast masking of the capsule vectors.
    o_ref[...] = (x * mask).astype(o_ref.dtype)


def caps_apply_mask_kernel(x_ref, m_ref, o_ref):
    # y_true path: mask is provided (TB, C, 1); just broadcast-multiply.
    o_ref[...] = (x_ref[...] * m_ref[...]).astype(o_ref.dtype)


def _pick_tb(batch):
    # Multiple batch elements per grid step; keep grid length >= 2 when
    # possible so v7x's two TensorCores both get work on the "parallel" axis.
    if batch % 2 == 0 and batch >= 2:
        return batch // 2
    return batch


def caps_mask_forward(x, y_true=None, tb=None):
    B, C, D = x.shape
    tb = _pick_tb(B) if tb is None else tb
    assert B % tb == 0
    grid = (B // tb,)
    params = pltpu.CompilerParams(dimension_semantics=("parallel",))

    if y_true is None:
        out = pl.pallas_call(
            caps_mask_kernel,
            out_shape=jax.ShapeDtypeStruct((B, C, D), x.dtype),
            grid=grid,
            in_specs=[pl.BlockSpec((tb, C, D), lambda i: (i, 0, 0))],
            out_specs=pl.BlockSpec((tb, C, D), lambda i: (i, 0, 0)),
            compiler_params=params,
        )(x)
    else:
        m = y_true.astype(x.dtype).reshape(B, C, 1)
        out = pl.pallas_call(
            caps_apply_mask_kernel,
            out_shape=jax.ShapeDtypeStruct((B, C, D), x.dtype),
            grid=grid,
            in_specs=[
                pl.BlockSpec((tb, C, D), lambda i: (i, 0, 0)),
                pl.BlockSpec((tb, C, 1), lambda i: (i, 0, 0)),
            ],
            out_specs=pl.BlockSpec((tb, C, D), lambda i: (i, 0, 0)),
            compiler_params=params,
        )(x, m)

    # Flatten to (B, C*D) outside the kernel: free reshape of a contiguous
    # array, avoids an in-kernel relayout crossing the (8,128) tile.
    return out.reshape(B, C * D)


def caps_mask_reference(x, y_true=None):
    """Pure-JAX reference mirroring the PyTorch forward."""
    if y_true is not None:
        mask = y_true.astype(x.dtype)
    else:
        temp = jnp.sqrt(jnp.sum(x ** 2, axis=-1))
        mask = jax.nn.one_hot(jnp.argmax(temp, axis=1), temp.shape[1],
                              dtype=x.dtype)
    masked = x * mask[..., None]
    return masked.reshape(x.shape[0], -1)


if __name__ == "__main__":
    # Small shapes consistent with a capsule head: batch=8, capsules=10, dim=16.
    B, C, D = 8, 10, 16
    key = jax.random.PRNGKey(0)
    kx, ky = jax.random.split(key)
    x = jax.random.normal(kx, (B, C, D), dtype=jnp.float32)

    # Inference path (mask derived from argmax of capsule norms).
    out = jax.block_until_ready(caps_mask_forward(x))
    ref = caps_mask_reference(x)
    assert out.shape == (B, C * D)
    assert jnp.allclose(out, ref, rtol=1e-6, atol=1e-6), float(
        jnp.max(jnp.abs(out - ref)))

    # Training path (mask = y_true one-hot labels).
    labels = jax.random.randint(ky, (B,), 0, C)
    y_true = jax.nn.one_hot(labels, C, dtype=jnp.float32)
    out2 = jax.block_until_ready(caps_mask_forward(x, y_true))
    ref2 = caps_mask_reference(x, y_true)
    assert jnp.allclose(out2, ref2, rtol=1e-6, atol=1e-6), float(
        jnp.max(jnp.abs(out2 - ref2)))

    print("KERNEL_OK")
</pallas_src>

<mosaic_0001>
module attributes {stable_mosaic.version = 11 : i64} {
  func.func @caps_mask_kernel(%arg0: i32, %arg1: memref<4x10x16xf32, #tpu.memory_space<vmem>>, %arg2: memref<4x10x16xf32, #tpu.memory_space<vmem>>) attributes {dimension_semantics = [#tpu.dimension_semantics<parallel>], iteration_bounds = array<i64: 2>, scalar_prefetch = 0 : i64, scratch_operands = 0 : i64, tpu.core_type = #tpu.core_type<tc>, window_params = [{transform_indices = @transform_0, window_bounds = array<i64: 4, 10, 16>}, {transform_indices = @transform_1, window_bounds = array<i64: 4, 10, 16>}]} {
    %c0 = arith.constant 0 : index
    %c0_0 = arith.constant 0 : index
    %c0_1 = arith.constant 0 : index
    %0 = vector.load %arg1[%c0, %c0_0, %c0_1] : memref<4x10x16xf32, #tpu.memory_space<vmem>>, vector<4x10x16xf32>
    %1 = arith.mulf %0, %0 : vector<4x10x16xf32>
    %cst = arith.constant dense<0.000000e+00> : vector<4x10xf32>
    %2 = vector.multi_reduction <add>, %1, %cst [2] : vector<4x10x16xf32> to vector<4x10xf32>
    %3 = vector.shape_cast %2 : vector<4x10xf32> to vector<4x10x1xf32>
    %cst_2 = arith.constant dense<0xFF800000> : vector<4x1xf32>
    %4 = vector.multi_reduction <maximumf>, %3, %cst_2 [1] : vector<4x10x1xf32> to vector<4x1xf32>
    %5 = vector.shape_cast %4 : vector<4x1xf32> to vector<4x1x1xf32>
    %6 = tpu.iota {dimensions = array<i32: 1>} : vector<4x10x1xi32>
    %7 = vector.broadcast %5 : vector<4x1x1xf32> to vector<4x10x1xf32>
    %8 = arith.cmpf oeq, %3, %7 : vector<4x10x1xf32>
    %c10_i32 = arith.constant 10 : i32
    %9 = vector.broadcast %c10_i32 : i32 to vector<4x10x1xi32>
    %10 = arith.select %8, %6, %9 : vector<4x10x1xi1>, vector<4x10x1xi32>
    %cst_3 = arith.constant dense<2147483647> : vector<4x1xi32>
    %11 = vector.multi_reduction <minsi>, %10, %cst_3 [1] : vector<4x10x1xi32> to vector<4x1xi32>
    %12 = vector.shape_cast %11 : vector<4x1xi32> to vector<4x1x1xi32>
    %13 = vector.broadcast %12 : vector<4x1x1xi32> to vector<4x10x1xi32>
    %14 = arith.cmpi eq, %6, %13 : vector<4x10x1xi32>
    %15 = arith.extui %14 : vector<4x10x1xi1> to vector<4x10x1xi32>
    %16 = arith.sitofp %15 : vector<4x10x1xi32> to vector<4x10x1xf32>
    %17 = vector.broadcast %16 : vector<4x10x1xf32> to vector<4x10x16xf32>
    %18 = arith.mulf %0, %17 : vector<4x10x16xf32>
    %c0_4 = arith.constant 0 : index
    %c0_5 = arith.constant 0 : index
    %c0_6 = arith.constant 0 : index
    %19 = vector.load %arg2[%c0_4, %c0_5, %c0_6] : memref<4x10x16xf32, #tpu.memory_space<vmem>>, vector<4x10x16xf32>
    tpu.vector_store %arg2[%c0_4, %c0_5, %c0_6], %18 {strides = array<i32>} : memref<4x10x16xf32, #tpu.memory_space<vmem>>, vector<4x10x16xf32>,
    return
  }
  func.func @transform_0(%arg0: i32) -> (i32, i32, i32) {
    %c0_i32 = arith.constant 0 : i32
    %c0_i32_0 = arith.constant 0 : i32
    %c0_i32_1 = arith.constant 0 : i32
    return %arg0, %c0_i32, %c0_i32_0 : i32, i32, i32
  }
  func.func @transform_1(%arg0: i32) -> (i32, i32, i32) {
    %c0_i32 = arith.constant 0 : i32
    %c0_i32_0 = arith.constant 0 : i32
    %c0_i32_1 = arith.constant 0 : i32
    return %arg0, %c0_i32, %c0_i32_0 : i32, i32, i32
  }
}

</mosaic_0001>

<llo_original>
// kernel: tpu_custom_call.1
$region0: #{tpu_custom_call.1}
  #allocation0 [shape = 'u32[]', space=smem, size = 0x4, offset = 0x4, fixed_abs, tag = 'smem constant byte address 0x4 - core index']
  #allocation1 [shape = 'u32[72,128]{1,0:T(1,128)}', space=vmem, size = 0x9000, scoped, tag = 'internal scratch']
  %s0 = inlined_call_operand.vmem [shape: f32[8,10,16], index: 0, kind: input, shape index: {}]
  %s1 = inlined_call_operand.vmem [shape: f32[8,10,16], index: 1, kind: output, shape index: {}]
  %s2 = sld [smem:[#allocation0]]
  $region37: #{tpu_custom_call.1} parent=0
    _
  %s4 = ssub.s32 1, %s2
  %s5 = scalar_select 0, %s4, %s2
  loop: start=0, step=1, limit=4
  $region2: #{tpu_custom_call.1} parent=0 // loop_pre_header
    _
  $region3: #{tpu_custom_call.1} parent=0 // loop_header
    %s7 = sphi 0, %s11
    %p8 = scmp.ge.s32.totalorder %s7, 4
    %s17 = sphi 0, %s19
    %s20 = sphi 0, %s17
    %s21 = sphi 0, %s20
    %s37 = sphi 0, %s21
    %s43 = sphi 0, %s45
    %s46 = sphi 0, %s43
    %s47 = sphi 0, %s46
    %s63 = sphi 0, %s47
  $region4: #{tpu_custom_call.1} parent=0 // loop_header_branch
    %10 = sbr.rel (%p8) target = $region8
  $region5: #{tpu_custom_call.1} parent=0 // loop_body
    %s12 = ssub.s32 %s7, 1
    %s13 = ssub.s32 %s7, 2
    %s14 = sadd.s32 %s7, 1
    %s15 = ssub.s32 %s7, %s14
    %p16 = scmp.eq.s32.totalorder %s15, 0
    %s18 = sadd.s32 %s17, 1
    %s19 = scalar_select %p16, %s17, %s18
    %p22 = pneg %p16
    %p23 = scmp.eq.s32.totalorder %s7, 1
    %p24 = por %p22, %p23
    %p25 = scmp.ne.s32.totalorder %s17, %s20
    %p26 = scmp.eq.s32.totalorder %s7, 0
    %p27 = por %p25, %p26
    %p28 = scmp.ne.s32.totalorder %s17, %s20
    %p29 = scmp.eq.s32.totalorder %s12, 1
    %p30 = por %p28, %p29
    %p31 = scmp.ne.s32.totalorder %s20, %s21
    %p32 = scmp.eq.s32.totalorder %s12, 0
    %p33 = por %p31, %p32
    %p34 = scmp.ne.s32.totalorder %s20, %s21
    %p35 = scmp.eq.s32.totalorder %s13, 1
    %p36 = por %p34, %p35
    %p38 = scmp.ne.s32.totalorder %s21, %s37
    %p39 = scmp.eq.s32.totalorder %s13, 0
    %p40 = por %p38, %p39
    %s41 = ssub.s32 %s7, %s14
    %p42 = scmp.eq.s32.totalorder %s41, 0
    %s44 = sadd.s32 %s43, 1
    %s45 = scalar_select %p42, %s43, %s44
    %p48 = pneg %p42
    %p49 = scmp.eq.s32.totalorder %s7, 1
    %p50 = por %p48, %p49
    %p51 = scmp.ne.s32.totalorder %s43, %s46
    %p52 = scmp.eq.s32.totalorder %s7, 0
    %p53 = por %p51, %p52
    %p54 = scmp.ne.s32.totalorder %s43, %s46
    %p55 = scmp.eq.s32.totalorder %s12, 1
    %p56 = por %p54, %p55
    %p57 = scmp.ne.s32.totalorder %s46, %s47
    %p58 = scmp.eq.s32.totalorder %s12, 0
    %p59 = por %p57, %p58
    %p60 = scmp.ne.s32.totalorder %s46, %s47
    %p61 = scmp.eq.s32.totalorder %s13, 1
    %p62 = por %p60, %p61
    %p64 = scmp.ne.s32.totalorder %s47, %s63
    %p65 = scmp.eq.s32.totalorder %s13, 0
    %p66 = por %p64, %p65
    %p67 = scmp.le.s32.totalorder 1, %s7
    %p68 = scmp.lt.s32.totalorder %s7, 3
    %p69 = pnand %p67, %p68
    %p70 = pneg %p69
    // Predicated region
    $region9: #{tpu_custom_call.1} parent=5 // pred_check
      _
    $region10: #{tpu_custom_call.1} parent=5 // pred_check_branch
      %72 = sbr.rel (%p69) target = $region12
    $region11: #{tpu_custom_call.1} parent=5 // pred_region
      %s73 = ssub.s32 %s7, 1
    $region12: #{tpu_custom_call.1} parent=5 // pred_fallthru
      _
    %p74 = scmp.lt.s32.totalorder %s7, 2
    // Predicated region
    $region13: #{tpu_custom_call.1} parent=5 // pred_check
      %p75 = pneg %p74
    $region14: #{tpu_custom_call.1} parent=5 // pred_check_branch
      %77 = sbr.rel (%p75) target = $region16
    $region15: #{tpu_custom_call.1} parent=5 // pred_region
      // Predicated region
      $region17: #{tpu_custom_call.1} parent=15 // pred_check
        %p78 = pneg %p27
      $region18: #{tpu_custom_call.1} parent=15 // pred_check_branch
        %80 = sbr.rel (%p78) target = $region20
      $region19: #{tpu_custom_call.1} parent=15 // pred_region
        %s81 = smul.u32 4, %s7
        %p82 = scmp.lt.s32.totalorder %s81, 7
        %s83 = scalar_select %p82, %s81, 7
        %s84 = smul.addr %s83, 2
        %s85 = smul.addr %s84, 8
        %s86 = scalar_lea.vmem %s0, %s85
        %s87 = smul.u32 4, %s7
      $region20: #{tpu_custom_call.1} parent=15 // pred_fallthru
        _
    $region16: #{tpu_custom_call.1} parent=5 // pred_fallthru
      _
    %p88 = scmp.le.s32.totalorder 1, %s7
    %p89 = scmp.lt.s32.totalorder %s7, 3
    %p90 = pnand %p88, %p89
    %p91 = pneg %p90
    // Predicated region
    $region21: #{tpu_custom_call.1} parent=5 // pred_check
      _
    $region22: #{tpu_custom_call.1} parent=5 // pred_check_branch
      %93 = sbr.rel (%p90) target = $region24
    $region23: #{tpu_custom_call.1} parent=5 // pred_region
      %s94 = ssub.s32 %s7, 1
      %s95 = smul.u32 4, %s12
      %p96 = scmp.lt.s32.totalorder %s95, 7
      %s97 = scalar_select %p96, %s95, 7
      %s98 = smul.addr %s97, 2
      %s99 = smul.addr %s98, 8
      %s100 = scalar_lea.vmem %s0, %s99
      %p101 = pneg %p33
      %p102 = pneg %p30
      %p103 = pneg %p59
      %p104 = pneg %p56
      %s105 = smul.u32 4, %s12
      %p106 = scmp.lt.s32.totalorder %s105, 7
      %s107 = scalar_select %p106, %s105, 7
      %s108 = smul.addr %s107, 2
      %s109 = smul.addr %s108, 8
      %s110 = scalar_lea.vmem %s1, %s109
      %s111 = smul.u32 4, %s12
      %p112 = scmp.lt.s32.totalorder %s111, 7
      %s113 = scalar_select %p112, %s111, 7
      %s114 = smul.addr %s113, 2
      %s115 = smul.addr %s114, 8
      %s116 = scalar_lea.vmem %s0, %s115
      %s117 = smul.u32 4, %s12
      %s118 = smul.u32 4, %s12
      %p119 = scmp.lt.s32.totalorder %s118, 7
      %s120 = scalar_select %p119, %s118, 7
      %s121 = smul.addr %s120, 2
      %s122 = smul.addr %s121, 8
      %s123 = scalar_lea.vmem %s1, %s122
      %s124 = smul.u32 4, %s12
      %v125 = vld [vmem:[%s116] sm:$0xff]
      %v126 = vld [vmem:[%s116 + $0x8] sm:$0x3]
      %v127 = vld [vmem:[%s116 + $0x10] sm:$0xff]
      %v128 = vld [vmem:[%s116 + $0x18] sm:$0x3]
      %v129 = vld [vmem:[%s116 + $0x20] sm:$0xff]
      %v130 = vld [vmem:[%s116 + $0x28] sm:$0x3]
      %v131 = vld [vmem:[%s116 + $0x30] sm:$0xff]
      %v132 = vld [vmem:[%s116 + $0x38] sm:$0x3]
      %v133 = vmul.f32 %v125, %v125
      %v134 = vmul.f32 %v126, %v126
      %v135 = vmul.f32 %v127, %v127
      %v136 = vmul.f32 %v128, %v128
      %v137 = vmul.f32 %v129, %v129
      %v138 = vmul.f32 %v130, %v130
      %v139 = vmul.f32 %v131, %v131
      %v140 = vmul.f32 %v132, %v132
      %vm141 = vcmask 130048
      %v142 = vsel %vm141, %v133, 0.0
      %143 = vadd.xlane.f32.xlu0 %v142
      %v144 = vpop.xlane.xlu0 %143
      %vm145 = vcmask 123904
      %v146 = vsel %vm145, %v134, 0.0
      %147 = vadd.xlane.f32.xlu0 %v146
      %v148 = vpop.xlane.xlu0 %147
      %v149 = vsel %vm141, %v135, 0.0
      %150 = vadd.xlane.f32.xlu0 %v149
      %v151 = vpop.xlane.xlu0 %150
      %v152 = vsel %vm145, %v136, 0.0
      %153 = vadd.xlane.f32.xlu0 %v152
      %v154 = vpop.xlane.xlu0 %153
      %v155 = vsel %vm141, %v137, 0.0
      %156 = vadd.xlane.f32.xlu0 %v155
      %v157 = vpop.xlane.xlu0 %156
      %v158 = vsel %vm145, %v138, 0.0
      %159 = vadd.xlane.f32.xlu0 %v158
      %v160 = vpop.xlane.xlu0 %159
      %v161 = vsel %vm141, %v139, 0.0
      %162 = vadd.xlane.f32.xlu0 %v161
      %v163 = vpop.xlane.xlu0 %162
      %v164 = vsel %vm145, %v140, 0.0
      %165 = vadd.xlane.f32.xlu0 %v164
      %v166 = vpop.xlane.xlu0 %165
      %vm167 = vcmask 1041408
      %v168 = vsel %vm167, %v148, -inf
      %v169 = vmax.f32 %v144, %v168
      %v170 = vrot.slane %v169, 4
      %v171 = vmax.f32 %v169, %v170
      %v172 = vrot.slane %v171, 2
      %v173 = vmax.f32 %v171, %v172
      %v174 = vrot.slane %v173, 1
      %v175 = vmax.f32 %v173, %v174
      %v176 = vsel %vm167, %v154, -inf
      %v177 = vmax.f32 %v151, %v176
      %v178 = vrot.slane %v177, 4
      %v179 = vmax.f32 %v177, %v178
      %v180 = vrot.slane %v179, 2
      %v181 = vmax.f32 %v179, %v180
      %v182 = vrot.slane %v181, 1
      %v183 = vmax.f32 %v181, %v182
      %v184 = vsel %vm167, %v160, -inf
      %v185 = vmax.f32 %v157, %v184
      %v186 = vrot.slane %v185, 4
      %v187 = vmax.f32 %v185, %v186
      %v188 = vrot.slane %v187, 2
      %v189 = vmax.f32 %v187, %v188
      %v190 = vrot.slane %v189, 1
      %v191 = vmax.f32 %v189, %v190
      %v192 = vsel %vm167, %v166, -inf
      %v193 = vmax.f32 %v163, %v192
      %v194 = vrot.slane %v193, 4
      %v195 = vmax.f32 %v193, %v194
      %v196 = vrot.slane %v195, 2
      %v197 = vmax.f32 %v195, %v196
      %v198 = vrot.slane %v197, 1
      %v199 = vmax.f32 %v197, %v198
      %v200 = vlaneseq
      %v201 = vshrl.u32 %v200, 7
      %v202 = vadd.s32 %v201, 8
      %vm203 = vcmp.eq.f32.partialorder %v144, %v175
      %vm204 = vcmp.eq.f32.partialorder %v148, %v175
      %vm205 = vcmp.eq.f32.partialorder %v151, %v183
      %vm206 = vcmp.eq.f32.partialorder %v154, %v183
      %vm207 = vcmp.eq.f32.partialorder %v157, %v191
      %vm208 = vcmp.eq.f32.partialorder %v160, %v191
      %vm209 = vcmp.eq.f32.partialorder %v163, %v199
      %vm210 = vcmp.eq.f32.partialorder %v166, %v199
      %v211 = vsel %vm203, %v201, 10
      %v212 = vsel %vm204, %v202, 10
      %v213 = vsel %vm205, %v201, 10
      %v214 = vsel %vm206, %v202, 10
      %v215 = vsel %vm207, %v201, 10
      %v216 = vsel %vm208, %v202, 10
      %v217 = vsel %vm209, %v201, 10
      %v218 = vsel %vm210, %v202, 10
      %v219 = vsel %vm167, %v212, 2147483647
      %vm220 = vcmp.lt.s32.totalorder %v211, %v219
      %v221 = vsel %vm220, %v211, %v219
      %v222 = vrot.slane %v221, 4
      %vm223 = vcmp.lt.s32.totalorder %v221, %v222
      %v224 = vsel %vm223, %v221, %v222
      %v225 = vrot.slane %v224, 2
      %vm226 = vcmp.lt.s32.totalorder %v224, %v225
      %v227 = vsel %vm226, %v224, %v225
      %v228 = vrot.slane %v227, 1
      %vm229 = vcmp.lt.s32.totalorder %v227, %v228
      %v230 = vsel %vm229, %v227, %v228
      %v231 = vsel %vm167, %v214, 2147483647
      %vm232 = vcmp.lt.s32.totalorder %v213, %v231
      %v233 = vsel %vm232, %v213, %v231
      %v234 = vrot.slane %v233, 4
      %vm235 = vcmp.lt.s32.totalorder %v233, %v234
      %v236 = vsel %vm235, %v233, %v234
      %v237 = vrot.slane %v236, 2
      %vm238 = vcmp.lt.s32.totalorder %v236, %v237
      %v239 = vsel %vm238, %v236, %v237
      %v240 = vrot.slane %v239, 1
      %vm241 = vcmp.lt.s32.totalorder %v239, %v240
      %v242 = vsel %vm241, %v239, %v240
      %v243 = vsel %vm167, %v216, 2147483647
      %vm244 = vcmp.lt.s32.totalorder %v215, %v243
      %v245 = vsel %vm244, %v215, %v243
      %v246 = vrot.slane %v245, 4
      %vm247 = vcmp.lt.s32.totalorder %v245, %v246
      %v248 = vsel %vm247, %v245, %v246
      %v249 = vrot.slane %v248, 2
      %vm250 = vcmp.lt.s32.totalorder %v248, %v249
      %v251 = vsel %vm250, %v248, %v249
      %v252 = vrot.slane %v251, 1
      %vm253 = vcmp.lt.s32.totalorder %v251, %v252
      %v254 = vsel %vm253, %v251, %v252
      %v255 = vsel %vm167, %v218, 2147483647
      %vm256 = vcmp.lt.s32.totalorder %v217, %v255
      %v257 = vsel %vm256, %v217, %v255
      %v258 = vrot.slane %v257, 4
      %vm259 = vcmp.lt.s32.totalorder %v257, %v258
      %v260 = vsel %vm259, %v257, %v258
      %v261 = vrot.slane %v260, 2
      %vm262 = vcmp.lt.s32.totalorder %v260, %v261
      %v263 = vsel %vm262, %v260, %v261
      %v264 = vrot.slane %v263, 1
      %vm265 = vcmp.lt.s32.totalorder %v263, %v264
      %v266 = vsel %vm265, %v263, %v264
      %vm267 = vcmp.eq.s32.totalorder %v201, %v230
      %vm268 = vcmp.eq.s32.totalorder %v202, %v230
      %vm269 = vcmp.eq.s32.totalorder %v201, %v242
      %vm270 = vcmp.eq.s32.totalorder %v202, %v242
      %vm271 = vcmp.eq.s32.totalorder %v201, %v254
      %vm272 = vcmp.eq.s32.totalorder %v202, %v254
      %vm273 = vcmp.eq.s32.totalorder %v201, %v266
      %vm274 = vcmp.eq.s32.totalorder %v202, %v266
      %v275 = vsel %vm267, 1, 0
      %v276 = vsel %vm268, 1, 0
      %v277 = vsel %vm269, 1, 0
      %v278 = vsel %vm270, 1, 0
      %v279 = vsel %vm271, 1, 0
      %v280 = vsel %vm272, 1, 0
      %v281 = vsel %vm273, 1, 0
      %v282 = vsel %vm274, 1, 0
      %v283 = vcvt.s32.f32 %v275
      %v284 = vcvt.s32.f32 %v276
      %v285 = vcvt.s32.f32 %v277
      %v286 = vcvt.s32.f32 %v278
      %v287 = vcvt.s32.f32 %v279
      %v288 = vcvt.s32.f32 %v280
      %v289 = vcvt.s32.f32 %v281
      %v290 = vcvt.s32.f32 %v282
      %v291 = vmul.f32 %v125, %v283
      %v292 = vmul.f32 %v126, %v284
      %v293 = vmul.f32 %v127, %v285
      %v294 = vmul.f32 %v128, %v286
      %v295 = vmul.f32 %v129, %v287
      %v296 = vmul.f32 %v130, %v288
      %v297 = vmul.f32 %v131, %v289
      %v298 = vmul.f32 %v132, %v290
      %299 = vst.msk [vmem:[%s123] sm:$0xff] %vm141, %v291
      %300 = vst.msk [vmem:[%s123 + $0x8] sm:$0x3] %vm145, %v292
      %301 = vst.msk [vmem:[%s123 + $0x10] sm:$0xff] %vm141, %v293
      %302 = vst.msk [vmem:[%s123 + $0x18] sm:$0x3] %vm145, %v294
      %303 = vst.msk [vmem:[%s123 + $0x20] sm:$0xff] %vm141, %v295
      %304 = vst.msk [vmem:[%s123 + $0x28] sm:$0x3] %vm145, %v296
      %305 = vst.msk [vmem:[%s123 + $0x30] sm:$0xff] %vm141, %v297
      %306 = vst.msk [vmem:[%s123 + $0x38] sm:$0x3] %vm145, %v298
      %s307 = smul.u32 4, %s12
      %p308 = scmp.lt.s32.totalorder %s307, 7
      %s309 = scalar_select %p308, %s307, 7
      %s310 = smul.addr %s309, 2
      %s311 = smul.addr %s310, 8
      %s312 = scalar_lea.vmem %s1, %s311
      // Predicated region
      $region25: #{tpu_custom_call.1} parent=23 // pred_check
        %p313 = pneg %p56
      $region26: #{tpu_custom_call.1} parent=23 // pred_check_branch
        %315 = sbr.rel (%p313) target = $region28
      $region27: #{tpu_custom_call.1} parent=23 // pred_region
        %s316 = smul.u32 4, %s12
      $region28: #{tpu_custom_call.1} parent=23 // pred_fallthru
        _
    $region24: #{tpu_custom_call.1} parent=5 // pred_fallthru
      _
    %p317 = scmp.le.s32.totalorder 2, %s7
    // Predicated region
    $region29: #{tpu_custom_call.1} parent=5 // pred_check
      %p318 = pneg %p317
    $region30: #{tpu_custom_call.1} parent=5 // pred_check_branch
      %320 = sbr.rel (%p318) target = $region32
    $region31: #{tpu_custom_call.1} parent=5 // pred_region
      %s321 = ssub.s32 %s7, 2
      // Predicated region
      $region33: #{tpu_custom_call.1} parent=31 // pred_check
        %p322 = pneg %p62
      $region34: #{tpu_custom_call.1} parent=31 // pred_check_branch
        %324 = sbr.rel (%p322) target = $region36
      $region35: #{tpu_custom_call.1} parent=31 // pred_region
        %s325 = smul.u32 4, %s13
        %p326 = scmp.lt.s32.totalorder %s325, 7
        %s327 = scalar_select %p326, %s325, 7
        %s328 = smul.addr %s327, 2
        %s329 = smul.addr %s328, 8
        %s330 = scalar_lea.vmem %s1, %s329
      $region36: #{tpu_custom_call.1} parent=31 // pred_fallthru
        _
    $region32: #{tpu_custom_call.1} parent=5 // pred_fallthru
      _
  $region6: #{tpu_custom_call.1} parent=0 // loop_footer
    %s11 = sadd.s32 1, %s7
  $region7: #{tpu_custom_call.1} parent=0 // loop_footer_branch
    %6 = sbr.rel target = $region3
  $region8: #{tpu_custom_call.1} parent=0 // loop_exit
    _

</llo_original>
